<compile_context>
chip_gen: v5e
topology: v5e:2x2
jax: 0.10.0
libtpu: 0.0.40
codegen_flags: <defaults>
</compile_context>

<pallas_src>
import jax
import jax.numpy as jnp
from jax.experimental import pallas as pl
from jax.experimental.pallas import tpu as pltpu

NUM_ACTIONS = 12
_LANE = 128
_SUBLANE = 8
_NEG_BIG = -1e30       # bias for padded action rows -> exp() underflows to 0


def _round_up(x, m):
    return ((x + m - 1) // m) * m


def _mlp_policy_kernel(x_ref,
                       w1_ref, b1_ref,
                       w2_ref, b2_ref,
                       w3_ref, b3_ref,
                       w4_ref, b4_ref,
                       w5_ref, b5_ref,
                       out_ref):
    """One batch tile of the policy MLP, feature-major.

    x_ref : (2, TB) f32     -- states, batch on lanes.
    w*_ref: PyTorch (out, in) layout; w2..w5 bf16 (or f32), biases f32 (out, 1).
    out_ref: (16, TB) f32   -- softmax probabilities, padded rows are 0.
    """
    x = x_ref[...]                                   # (2, TB) f32
    cdt = w2_ref.dtype                               # MXU operand dtype, f32 accum

    # ---- Linear(2, 64) + ReLU on the VPU ------------------------------------
    # K=2 contraction: two outer-product FMAs instead of an MXU pass.
    h = (w1_ref[:, 0:1] * x[0:1, :]
         + w1_ref[:, 1:2] * x[1:2, :]
         + b1_ref[...])                              # (64, TB) f32
    h = jnp.maximum(h, 0.0).astype(cdt)              # fused ReLU + bf16 cast

    # ---- Linear(64, 64) + ReLU : (64,64) @ (64,TB) ---------------------------
    h = jnp.dot(w2_ref[...], h, preferred_element_type=jnp.float32) + b2_ref[...]
    h = jnp.maximum(h, 0.0).astype(cdt)

    # ---- Linear(64, 128) + ReLU : (128,64) @ (64,TB) -------------------------
    h = jnp.dot(w3_ref[...], h, preferred_element_type=jnp.float32) + b3_ref[...]
    h = jnp.maximum(h, 0.0).astype(cdt)

    # ---- Linear(128, 64) + ReLU : (64,128) @ (128,TB) ------------------------
    h = jnp.dot(w4_ref[...], h, preferred_element_type=jnp.float32) + b4_ref[...]
    h = jnp.maximum(h, 0.0).astype(cdt)

    # ---- Head: Linear(64, 16-padded num_actions) : (16,64) @ (64,TB) ---------
    # Padded action rows have zero weights and a -1e30 bias, so after the
    # max-subtraction their exp() is exactly 0 and they drop out of the softmax.
    logits = jnp.dot(w5_ref[...], h, preferred_element_type=jnp.float32) + b5_ref[...]

    # ---- Softmax over the 16-sublane action axis -----------------------------
    m = jnp.max(logits, axis=0, keepdims=True)       # (1, TB)
    e = jnp.exp(logits - m)                          # (16, TB)
    denom = jnp.sum(e, axis=0, keepdims=True)        # (1, TB)
    out_ref[...] = (e / denom).astype(out_ref.dtype)  # exact divide (probs feed sampling)


def deep_policy_gradient_forward(state, params, *,
                                 matmul_dtype=jnp.bfloat16,
                                 batch_tile=2048):
    """state: (B, 2) float32.
    params: dict of (W_k, b_k) in PyTorch layout: W_k (out, in), b_k (out, 1).

    Returns (B, num_actions) softmax probabilities (float32).
    """
    B, feat = state.shape
    assert feat == 2, "DeepPolicyGradient expects 2-dimensional states"
    num_actions, head_in = params["w5"].shape
    na_pad = _round_up(num_actions, _SUBLANE)        # 12 -> 16 sublanes

    # ---- batch tiling (batch lives on the lane axis: tile multiple of 128) ---
    batch_tile = max(_LANE, _round_up(int(batch_tile), _LANE))
    # Cap the tile at ~half the batch so v7x gets >= 2 grid steps to shard
    # across its two TensorCores whenever B allows.
    tb = min(batch_tile, _round_up(pl.cdiv(max(B, 1), 2), _LANE))
    bp = _round_up(max(B, 1), tb)
    n_tiles = bp // tb

    # ---- host-side layout prep (cheap XLA ops, outside the kernel) ----------
    # Transpose the state to (2, bp): lane-dense input DMA, batch on lanes.
    x_t = jnp.zeros((2, bp), jnp.float32).at[:, :B].set(
        state.astype(jnp.float32).T)

    w1 = params["w1"].astype(jnp.float32)            # VPU layer stays f32
    b1 = params["b1"].astype(jnp.float32)
    w2 = params["w2"].astype(matmul_dtype)
    b2 = params["b2"].astype(jnp.float32)
    w3 = params["w3"].astype(matmul_dtype)
    b3 = params["b3"].astype(jnp.float32)
    w4 = params["w4"].astype(matmul_dtype)
    b4 = params["b4"].astype(jnp.float32)
    # Head padded to 16 sublanes: zero weight rows, -1e30 bias rows.
    w5 = jnp.zeros((na_pad, head_in), jnp.float32)
    w5 = w5.at[:num_actions, :].set(params["w5"].astype(jnp.float32))
    w5 = w5.astype(matmul_dtype)
    b5 = jnp.full((na_pad, 1), _NEG_BIG, jnp.float32)
    b5 = b5.at[:num_actions, :].set(params["b5"].astype(jnp.float32))

    operands = (x_t, w1, b1, w2, b2, w3, b3, w4, b4, w5, b5)

    # Weights/biases: same block index every grid step -> stay resident in VMEM.
    def resident(a):
        return pl.BlockSpec(a.shape, lambda i: (0, 0))

    in_specs = [pl.BlockSpec((2, tb), lambda i: (0, i))]
    in_specs += [resident(a) for a in operands[1:]]

    # Advisory cost estimate so XLA schedules the surrounding pad/slice well.
    flops = 2 * bp * (2 * 64 + 64 * 64 + 64 * 128 + 128 * 64 + 64 * na_pad)
    weight_bytes = sum(int(a.size) * a.dtype.itemsize for a in operands[1:])
    bytes_accessed = 2 * bp * 4 + na_pad * bp * 4 + weight_bytes
    cost = pl.CostEstimate(flops=int(flops),
                           transcendentals=int(bp * na_pad),
                           bytes_accessed=int(bytes_accessed))

    out = pl.pallas_call(
        _mlp_policy_kernel,
        out_shape=jax.ShapeDtypeStruct((na_pad, bp), jnp.float32),
        grid=(n_tiles,),
        in_specs=in_specs,
        out_specs=pl.BlockSpec((na_pad, tb), lambda i: (0, i)),
        compiler_params=pltpu.CompilerParams(
            # Batch axis is independent: double-buffer state/output DMAs and
            # (on v7x) shard grid steps across the two TensorCores.
            dimension_semantics=("parallel",),
            # Small footprint even at TB=2048-4096; 32 MiB is within every
            # generation's budget (v5e 128 MiB phys, v6e 128 MiB, v7x 64 MiB).
            vmem_limit_bytes=32 * 1024 * 1024),
        cost_estimate=cost,
    )(*operands)

    # Back to batch-major; drop padded action rows and padded batch columns.
    return out[:num_actions, :B].T


def init_params(key, num_actions=NUM_ACTIONS):
    """PyTorch nn.Linear-style init (uniform +-1/sqrt(fan_in)).
    Weights stored in PyTorch (out, in) layout; biases as (out, 1) columns."""
    dims = [(64, 2), (64, 64), (128, 64), (64, 128), (num_actions, 64)]
    params = {}
    for i, (fan_out, fan_in) in enumerate(dims, start=1):
        key, kw, kb = jax.random.split(key, 3)
        bound = float(1.0 / (fan_in ** 0.5))
        params[f"w{i}"] = jax.random.uniform(
            kw, (fan_out, fan_in), jnp.float32, minval=-bound, maxval=bound)
        params[f"b{i}"] = jax.random.uniform(
            kb, (fan_out, 1), jnp.float32, minval=-bound, maxval=bound)
    return params


def _reference_forward(state, params, matmul_dtype=jnp.bfloat16):
    """Pure-JAX reference using the same bf16-operand / f32-accumulate dot path."""
    x = state.astype(jnp.float32)
    h = jnp.maximum(x @ params["w1"].T + params["b1"].T, 0.0)
    for i in (2, 3, 4):
        h = jnp.dot(h.astype(matmul_dtype), params[f"w{i}"].T.astype(matmul_dtype),
                    preferred_element_type=jnp.float32) + params[f"b{i}"].T
        h = jnp.maximum(h, 0.0)
    logits = jnp.dot(h.astype(matmul_dtype), params["w5"].T.astype(matmul_dtype),
                     preferred_element_type=jnp.float32) + params["b5"].T
    return jax.nn.softmax(logits, axis=-1)


if __name__ == "__main__":
    key = jax.random.PRNGKey(0)
    kp, kx = jax.random.split(key)

    params = init_params(kp)
    batch = 8
    state = jax.random.normal(kx, (batch, 2), dtype=jnp.float32)  # (B, 2) states

    probs = deep_policy_gradient_forward(state, params)
    probs = jax.block_until_ready(probs)

    # Sanity-check against a pure-JAX reference with the matching bf16 dot path.
    ref = _reference_forward(state, params)
    assert probs.shape == (batch, NUM_ACTIONS)
    assert bool(jnp.all(jnp.isfinite(probs)))
    # Exact softmax divide -> rows sum to 1 to fp accuracy.
    assert jnp.allclose(jnp.sum(probs, axis=-1), 1.0, atol=1e-4)
    # bf16 MXU operands -> loosened comparison tolerance vs the bf16 JAX reference.
    assert jnp.allclose(probs, ref, rtol=2e-2, atol=5e-4)

    print("KERNEL_OK")
</pallas_src>

<mosaic_0001>
module attributes {stable_mosaic.version = 11 : i64} {
  func.func @_mlp_policy_kernel(%arg0: i32, %arg1: memref<2x128xf32, #tpu.memory_space<vmem>>, %arg2: memref<64x2xf32, #tpu.memory_space<vmem>>, %arg3: memref<64x1xf32, #tpu.memory_space<vmem>>, %arg4: memref<64x64xbf16, #tpu.memory_space<vmem>>, %arg5: memref<64x1xf32, #tpu.memory_space<vmem>>, %arg6: memref<128x64xbf16, #tpu.memory_space<vmem>>, %arg7: memref<128x1xf32, #tpu.memory_space<vmem>>, %arg8: memref<64x128xbf16, #tpu.memory_space<vmem>>, %arg9: memref<64x1xf32, #tpu.memory_space<vmem>>, %arg10: memref<16x64xbf16, #tpu.memory_space<vmem>>, %arg11: memref<16x1xf32, #tpu.memory_space<vmem>>, %arg12: memref<16x128xf32, #tpu.memory_space<vmem>>) attributes {dimension_semantics = [#tpu.dimension_semantics<parallel>], iteration_bounds = array<i64: 1>, scalar_prefetch = 0 : i64, scratch_operands = 0 : i64, tpu.core_type = #tpu.core_type<tc>, window_params = [{transform_indices = @transform_0, window_bounds = array<i64: 2, 128>}, {pipeline_mode = #tpu.pipeline_mode<synchronous>, transform_indices = @transform_1, window_bounds = array<i64: 64, 2>}, {pipeline_mode = #tpu.pipeline_mode<synchronous>, transform_indices = @transform_2, window_bounds = array<i64: 64, 1>}, {pipeline_mode = #tpu.pipeline_mode<synchronous>, transform_indices = @transform_3, window_bounds = array<i64: 64, 64>}, {pipeline_mode = #tpu.pipeline_mode<synchronous>, transform_indices = @transform_4, window_bounds = array<i64: 64, 1>}, {pipeline_mode = #tpu.pipeline_mode<synchronous>, transform_indices = @transform_5, window_bounds = array<i64: 128, 64>}, {pipeline_mode = #tpu.pipeline_mode<synchronous>, transform_indices = @transform_6, window_bounds = array<i64: 128, 1>}, {pipeline_mode = #tpu.pipeline_mode<synchronous>, transform_indices = @transform_7, window_bounds = array<i64: 64, 128>}, {pipeline_mode = #tpu.pipeline_mode<synchronous>, transform_indices = @transform_8, window_bounds = array<i64: 64, 1>}, {pipeline_mode = #tpu.pipeline_mode<synchronous>, transform_indices = @transform_9, window_bounds = array<i64: 16, 64>}, {pipeline_mode = #tpu.pipeline_mode<synchronous>, transform_indices = @transform_10, window_bounds = array<i64: 16, 1>}, {transform_indices = @transform_11, window_bounds = array<i64: 16, 128>}]} {
    %c0 = arith.constant 0 : index
    %c0_0 = arith.constant 0 : index
    %0 = vector.load %arg1[%c0, %c0_0] : memref<2x128xf32, #tpu.memory_space<vmem>>, vector<2x128xf32>
    %c0_1 = arith.constant 0 : index
    %c0_2 = arith.constant 0 : index
    %1 = vector.load %arg2[%c0_1, %c0_2] : memref<64x2xf32, #tpu.memory_space<vmem>>, vector<64x1xf32>
    %2 = vector.extract_strided_slice %0 {offsets = [0, 0], sizes = [1, 128], strides = [1, 1]} : vector<2x128xf32> to vector<1x128xf32>
    %3 = vector.broadcast %1 : vector<64x1xf32> to vector<64x128xf32>
    %4 = vector.broadcast %2 : vector<1x128xf32> to vector<64x128xf32>
    %5 = arith.mulf %3, %4 : vector<64x128xf32>
    %c0_3 = arith.constant 0 : index
    %c1 = arith.constant 1 : index
    %6 = vector.load %arg2[%c0_3, %c1] : memref<64x2xf32, #tpu.memory_space<vmem>>, vector<64x1xf32>
    %7 = vector.extract_strided_slice %0 {offsets = [1, 0], sizes = [1, 128], strides = [1, 1]} : vector<2x128xf32> to vector<1x128xf32>
    %8 = vector.broadcast %6 : vector<64x1xf32> to vector<64x128xf32>
    %9 = vector.broadcast %7 : vector<1x128xf32> to vector<64x128xf32>
    %10 = arith.mulf %8, %9 : vector<64x128xf32>
    %11 = arith.addf %5, %10 : vector<64x128xf32>
    %c0_4 = arith.constant 0 : index
    %c0_5 = arith.constant 0 : index
    %12 = vector.load %arg3[%c0_4, %c0_5] : memref<64x1xf32, #tpu.memory_space<vmem>>, vector<64x1xf32>
    %13 = vector.broadcast %12 : vector<64x1xf32> to vector<64x128xf32>
    %14 = arith.addf %11, %13 : vector<64x128xf32>
    %cst = arith.constant 0.000000e+00 : f32
    %15 = vector.broadcast %cst : f32 to vector<64x128xf32>
    %16 = arith.maximumf %14, %15 : vector<64x128xf32>
    %17 = arith.truncf %16 : vector<64x128xf32> to vector<64x128xbf16>
    %c0_6 = arith.constant 0 : index
    %c0_7 = arith.constant 0 : index
    %18 = vector.load %arg4[%c0_6, %c0_7] : memref<64x64xbf16, #tpu.memory_space<vmem>>, vector<64x64xbf16>
    %cst_8 = arith.constant dense<0.000000e+00> : vector<64x128xf32>
    %19 = tpu.matmul %18, %17, %cst_8 {dimension_numbers = #tpu.dot_dimension_numbers<[1], [0], [0], [1], [0, 0, 1, 1], [], []>} : vector<64x64xbf16>, vector<64x128xbf16>, vector<64x128xf32> -> vector<64x128xf32>
    %c0_9 = arith.constant 0 : index
    %c0_10 = arith.constant 0 : index
    %20 = vector.load %arg5[%c0_9, %c0_10] : memref<64x1xf32, #tpu.memory_space<vmem>>, vector<64x1xf32>
    %21 = vector.broadcast %20 : vector<64x1xf32> to vector<64x128xf32>
    %22 = arith.addf %19, %21 : vector<64x128xf32>
    %cst_11 = arith.constant 0.000000e+00 : f32
    %23 = vector.broadcast %cst_11 : f32 to vector<64x128xf32>
    %24 = arith.maximumf %22, %23 : vector<64x128xf32>
    %25 = arith.truncf %24 : vector<64x128xf32> to vector<64x128xbf16>
    %c0_12 = arith.constant 0 : index
    %c0_13 = arith.constant 0 : index
    %26 = vector.load %arg6[%c0_12, %c0_13] : memref<128x64xbf16, #tpu.memory_space<vmem>>, vector<128x64xbf16>
    %cst_14 = arith.constant dense<0.000000e+00> : vector<128x128xf32>
    %27 = tpu.matmul %26, %25, %cst_14 {dimension_numbers = #tpu.dot_dimension_numbers<[1], [0], [0], [1], [0, 0, 1, 1], [], []>} : vector<128x64xbf16>, vector<64x128xbf16>, vector<128x128xf32> -> vector<128x128xf32>
    %c0_15 = arith.constant 0 : index
    %c0_16 = arith.constant 0 : index
    %28 = vector.load %arg7[%c0_15, %c0_16] : memref<128x1xf32, #tpu.memory_space<vmem>>, vector<128x1xf32>
    %29 = vector.broadcast %28 : vector<128x1xf32> to vector<128x128xf32>
    %30 = arith.addf %27, %29 : vector<128x128xf32>
    %cst_17 = arith.constant 0.000000e+00 : f32
    %31 = vector.broadcast %cst_17 : f32 to vector<128x128xf32>
    %32 = arith.maximumf %30, %31 : vector<128x128xf32>
    %33 = arith.truncf %32 : vector<128x128xf32> to vector<128x128xbf16>
    %c0_18 = arith.constant 0 : index
    %c0_19 = arith.constant 0 : index
    %34 = vector.load %arg8[%c0_18, %c0_19] : memref<64x128xbf16, #tpu.memory_space<vmem>>, vector<64x128xbf16>
    %cst_20 = arith.constant dense<0.000000e+00> : vector<64x128xf32>
    %35 = tpu.matmul %34, %33, %cst_20 {dimension_numbers = #tpu.dot_dimension_numbers<[1], [0], [0], [1], [0, 0, 1, 1], [], []>} : vector<64x128xbf16>, vector<128x128xbf16>, vector<64x128xf32> -> vector<64x128xf32>
    %c0_21 = arith.constant 0 : index
    %c0_22 = arith.constant 0 : index
    %36 = vector.load %arg9[%c0_21, %c0_22] : memref<64x1xf32, #tpu.memory_space<vmem>>, vector<64x1xf32>
    %37 = vector.broadcast %36 : vector<64x1xf32> to vector<64x128xf32>
    %38 = arith.addf %35, %37 : vector<64x128xf32>
    %cst_23 = arith.constant 0.000000e+00 : f32
    %39 = vector.broadcast %cst_23 : f32 to vector<64x128xf32>
    %40 = arith.maximumf %38, %39 : vector<64x128xf32>
    %41 = arith.truncf %40 : vector<64x128xf32> to vector<64x128xbf16>
    %c0_24 = arith.constant 0 : index
    %c0_25 = arith.constant 0 : index
    %42 = vector.load %arg10[%c0_24, %c0_25] : memref<16x64xbf16, #tpu.memory_space<vmem>>, vector<16x64xbf16>
    %cst_26 = arith.constant dense<0.000000e+00> : vector<16x128xf32>
    %43 = tpu.matmul %42, %41, %cst_26 {dimension_numbers = #tpu.dot_dimension_numbers<[1], [0], [0], [1], [0, 0, 1, 1], [], []>} : vector<16x64xbf16>, vector<64x128xbf16>, vector<16x128xf32> -> vector<16x128xf32>
    %c0_27 = arith.constant 0 : index
    %c0_28 = arith.constant 0 : index
    %44 = vector.load %arg11[%c0_27, %c0_28] : memref<16x1xf32, #tpu.memory_space<vmem>>, vector<16x1xf32>
    %45 = vector.broadcast %44 : vector<16x1xf32> to vector<16x128xf32>
    %46 = arith.addf %43, %45 : vector<16x128xf32>
    %cst_29 = arith.constant dense<0xFF800000> : vector<128xf32>
    %47 = vector.multi_reduction <maximumf>, %46, %cst_29 [0] : vector<16x128xf32> to vector<128xf32>
    %48 = vector.shape_cast %47 : vector<128xf32> to vector<1x128xf32>
    %49 = vector.broadcast %48 : vector<1x128xf32> to vector<16x128xf32>
    %50 = arith.subf %46, %49 : vector<16x128xf32>
    %51 = math.exp %50 : vector<16x128xf32>
    %cst_30 = arith.constant dense<0.000000e+00> : vector<128xf32>
    %52 = vector.multi_reduction <add>, %51, %cst_30 [0] : vector<16x128xf32> to vector<128xf32>
    %53 = vector.shape_cast %52 : vector<128xf32> to vector<1x128xf32>
    %54 = vector.broadcast %53 : vector<1x128xf32> to vector<16x128xf32>
    %55 = arith.divf %51, %54 : vector<16x128xf32>
    %c0_31 = arith.constant 0 : index
    %c0_32 = arith.constant 0 : index
    %56 = vector.load %arg12[%c0_31, %c0_32] : memref<16x128xf32, #tpu.memory_space<vmem>>, vector<16x128xf32>
    tpu.vector_store %arg12[%c0_31, %c0_32], %55 {strides = array<i32>} : memref<16x128xf32, #tpu.memory_space<vmem>>, vector<16x128xf32>,
    return
  }
  func.func @transform_0(%arg0: i32) -> (i32, i32) {
    %c0_i32 = arith.constant 0 : i32
    %c0_i32_0 = arith.constant 0 : i32
    return %c0_i32, %arg0 : i32, i32
  }
  func.func @transform_1(%arg0: i32) -> (i32, i32) {
    %c0_i32 = arith.constant 0 : i32
    %c0_i32_0 = arith.constant 0 : i32
    %c0_i32_1 = arith.constant 0 : i32
    return %c0_i32, %c0_i32_0 : i32, i32
  }
  func.func @transform_2(%arg0: i32) -> (i32, i32) {
    %c0_i32 = arith.constant 0 : i32
    %c0_i32_0 = arith.constant 0 : i32
    %c0_i32_1 = arith.constant 0 : i32
    return %c0_i32, %c0_i32_0 : i32, i32
  }
  func.func @transform_3(%arg0: i32) -> (i32, i32) {
    %c0_i32 = arith.constant 0 : i32
    %c0_i32_0 = arith.constant 0 : i32
    %c0_i32_1 = arith.constant 0 : i32
    return %c0_i32, %c0_i32_0 : i32, i32
  }
  func.func @transform_4(%arg0: i32) -> (i32, i32) {
    %c0_i32 = arith.constant 0 : i32
    %c0_i32_0 = arith.constant 0 : i32
    %c0_i32_1 = arith.constant 0 : i32
    return %c0_i32, %c0_i32_0 : i32, i32
  }
  func.func @transform_5(%arg0: i32) -> (i32, i32) {
    %c0_i32 = arith.constant 0 : i32
    %c0_i32_0 = arith.constant 0 : i32
    %c0_i32_1 = arith.constant 0 : i32
    return %c0_i32, %c0_i32_0 : i32, i32
  }
  func.func @transform_6(%arg0: i32) -> (i32, i32) {
    %c0_i32 = arith.constant 0 : i32
    %c0_i32_0 = arith.constant 0 : i32
    %c0_i32_1 = arith.constant 0 : i32
    return %c0_i32, %c0_i32_0 : i32, i32
  }
  func.func @transform_7(%arg0: i32) -> (i32, i32) {
    %c0_i32 = arith.constant 0 : i32
    %c0_i32_0 = arith.constant 0 : i32
    %c0_i32_1 = arith.constant 0 : i32
    return %c0_i32, %c0_i32_0 : i32, i32
  }
  func.func @transform_8(%arg0: i32) -> (i32, i32) {
    %c0_i32 = arith.constant 0 : i32
    %c0_i32_0 = arith.constant 0 : i32
    %c0_i32_1 = arith.constant 0 : i32
    return %c0_i32, %c0_i32_0 : i32, i32
  }
  func.func @transform_9(%arg0: i32) -> (i32, i32) {
    %c0_i32 = arith.constant 0 : i32
    %c0_i32_0 = arith.constant 0 : i32
    %c0_i32_1 = arith.constant 0 : i32
    return %c0_i32, %c0_i32_0 : i32, i32
  }
  func.func @transform_10(%arg0: i32) -> (i32, i32) {
    %c0_i32 = arith.constant 0 : i32
    %c0_i32_0 = arith.constant 0 : i32
    %c0_i32_1 = arith.constant 0 : i32
    return %c0_i32, %c0_i32_0 : i32, i32
  }
  func.func @transform_11(%arg0: i32) -> (i32, i32) {
    %c0_i32 = arith.constant 0 : i32
    %c0_i32_0 = arith.constant 0 : i32
    return %c0_i32, %arg0 : i32, i32
  }
}

</mosaic_0001>

<llo_original>
// kernel: tpu_custom_call.1
$region0: #{tpu_custom_call.1}
  #allocation0 [shape = 'u32[]', space=smem, size = 0x4, offset = 0x4, fixed_abs, tag = 'smem constant byte address 0x4 - core index']
  #allocation1 [shape = 'u32[72,128]{1,0:T(1,128)}', space=vmem, size = 0x9000, scoped, tag = 'internal scratch']
  %s0 = inlined_call_operand.vmem [shape: f32[2,128], index: 0, kind: input, shape index: {}]
  %s1 = inlined_call_operand.vmem [shape: f32[64,2], index: 1, kind: input, shape index: {}]
  %s2 = inlined_call_operand.vmem [shape: f32[64,1], index: 2, kind: input, shape index: {}]
  %s3 = inlined_call_operand.vmem [shape: bf16[64,64], index: 3, kind: input, shape index: {}]
  %s4 = inlined_call_operand.vmem [shape: f32[64,1], index: 4, kind: input, shape index: {}]
  %s5 = inlined_call_operand.vmem [shape: bf16[128,64], index: 5, kind: input, shape index: {}]
  %s6 = inlined_call_operand.vmem [shape: f32[128,1], index: 6, kind: input, shape index: {}]
  %s7 = inlined_call_operand.vmem [shape: bf16[64,128], index: 7, kind: input, shape index: {}]
  %s8 = inlined_call_operand.vmem [shape: f32[64,1], index: 8, kind: input, shape index: {}]
  %s9 = inlined_call_operand.vmem [shape: bf16[16,64], index: 9, kind: input, shape index: {}]
  %s10 = inlined_call_operand.vmem [shape: f32[16,1], index: 10, kind: input, shape index: {}]
  %s11 = inlined_call_operand.hbm [shape: f32[16,128], index: 11, kind: output, shape index: {}]
  %s12 = sld [smem:[#allocation0]]
  $region54: #{tpu_custom_call.1} parent=0
    _
  %s14 = ssub.s32 1, %s12
  %s15 = scalar_select 0, %s14, %s12
  $region1: #{tpu_custom_call.1} parent=0
    #allocation2 [shape = 'u8[8192]{0}', space=vmem, size = 0x2000, scoped, tag = 'output window, operand 0, single buffered']
    #allocation3 [shape = 's32[1]{0}', space=sflag, size = 0x4, scoped, tag = 'scoped memory for tpu_custom_call.1']
    %16 = vsyncpa [#allocation3], 0
    // Predicated region
    $region2: #{tpu_custom_call.1} parent=1 // pred_check
      _
    $region3: #{tpu_custom_call.1} parent=1 // pred_check_branch
      %18 = sbr.rel (0) target = $region5
    $region4: #{tpu_custom_call.1} parent=1 // pred_region
      _
    $region5: #{tpu_custom_call.1} parent=1 // pred_fallthru
      _
    // Predicated region
    $region6: #{tpu_custom_call.1} parent=1 // pred_check
      _
    $region7: #{tpu_custom_call.1} parent=1 // pred_check_branch
      %20 = sbr.rel (0) target = $region9
    $region8: #{tpu_custom_call.1} parent=1 // pred_region
      _
    $region9: #{tpu_custom_call.1} parent=1 // pred_fallthru
      _
    // Predicated region
    $region10: #{tpu_custom_call.1} parent=1 // pred_check
      _
    $region11: #{tpu_custom_call.1} parent=1 // pred_check_branch
      %22 = sbr.rel (0) target = $region13
    $region12: #{tpu_custom_call.1} parent=1 // pred_region
      _
    $region13: #{tpu_custom_call.1} parent=1 // pred_fallthru
      _
    // Predicated region
    $region14: #{tpu_custom_call.1} parent=1 // pred_check
      _
    $region15: #{tpu_custom_call.1} parent=1 // pred_check_branch
      %24 = sbr.rel (0) target = $region17
    $region16: #{tpu_custom_call.1} parent=1 // pred_region
      _
    $region17: #{tpu_custom_call.1} parent=1 // pred_fallthru
      _
    // Predicated region
    $region18: #{tpu_custom_call.1} parent=1 // pred_check
      _
    $region19: #{tpu_custom_call.1} parent=1 // pred_check_branch
      %26 = sbr.rel (0) target = $region21
    $region20: #{tpu_custom_call.1} parent=1 // pred_region
      _
    $region21: #{tpu_custom_call.1} parent=1 // pred_fallthru
      _
    // Predicated region
    $region22: #{tpu_custom_call.1} parent=1 // pred_check
      _
    $region23: #{tpu_custom_call.1} parent=1 // pred_check_branch
      %28 = sbr.rel (0) target = $region25
    $region24: #{tpu_custom_call.1} parent=1 // pred_region
      _
    $region25: #{tpu_custom_call.1} parent=1 // pred_fallthru
      _
    // Predicated region
    $region26: #{tpu_custom_call.1} parent=1 // pred_check
      _
    $region27: #{tpu_custom_call.1} parent=1 // pred_check_branch
      %30 = sbr.rel (0) target = $region29
    $region28: #{tpu_custom_call.1} parent=1 // pred_region
      _
    $region29: #{tpu_custom_call.1} parent=1 // pred_fallthru
      _
    // Predicated region
    $region30: #{tpu_custom_call.1} parent=1 // pred_check
      _
    $region31: #{tpu_custom_call.1} parent=1 // pred_check_branch
      %32 = sbr.rel (0) target = $region33
    $region32: #{tpu_custom_call.1} parent=1 // pred_region
      _
    $region33: #{tpu_custom_call.1} parent=1 // pred_fallthru
      _
    // Predicated region
    $region34: #{tpu_custom_call.1} parent=1 // pred_check
      _
    $region35: #{tpu_custom_call.1} parent=1 // pred_check_branch
      %34 = sbr.rel (0) target = $region37
    $region36: #{tpu_custom_call.1} parent=1 // pred_region
      _
    $region37: #{tpu_custom_call.1} parent=1 // pred_fallthru
      _
    // Predicated region
    $region38: #{tpu_custom_call.1} parent=1 // pred_check
      _
    $region39: #{tpu_custom_call.1} parent=1 // pred_check_branch
      %36 = sbr.rel (0) target = $region41
    $region40: #{tpu_custom_call.1} parent=1 // pred_region
      _
    $region41: #{tpu_custom_call.1} parent=1 // pred_fallthru
      _
    // Predicated region
    $region42: #{tpu_custom_call.1} parent=1 // pred_check
      _
    $region43: #{tpu_custom_call.1} parent=1 // pred_check_branch
      %38 = sbr.rel (0) target = $region45
    $region44: #{tpu_custom_call.1} parent=1 // pred_region
      _
    $region45: #{tpu_custom_call.1} parent=1 // pred_fallthru
      _
    %v40 = vld [vmem:[%s0] sm:$0x3]
    %v41 = vld [vmem:[%s1] sm:$0xff]
    %v42 = vld [vmem:[%s1 + $0x8] sm:$0xff]
    %v43 = vld [vmem:[%s1 + $0x10] sm:$0xff]
    %v44 = vld [vmem:[%s1 + $0x18] sm:$0xff]
    %v45 = vld [vmem:[%s1 + $0x20] sm:$0xff]
    %v46 = vld [vmem:[%s1 + $0x28] sm:$0xff]
    %v47 = vld [vmem:[%s1 + $0x30] sm:$0xff]
    %v48 = vld [vmem:[%s1 + $0x38] sm:$0xff]
    %50 = vset.pattern.permute.xlu0 0
    %51 = vperm.xlu0 %50, %v41
    %v52 = vpop.permute.xlu0 %51
    %55 = vset.pattern.permute.xlu0 0
    %56 = vperm.xlu0 %55, %v42
    %v57 = vpop.permute.xlu0 %56
    %60 = vset.pattern.permute.xlu0 0
    %61 = vperm.xlu0 %60, %v43
    %v62 = vpop.permute.xlu0 %61
    %65 = vset.pattern.permute.xlu0 0
    %66 = vperm.xlu0 %65, %v44
    %v67 = vpop.permute.xlu0 %66
    %70 = vset.pattern.permute.xlu0 0
    %71 = vperm.xlu0 %70, %v45
    %v72 = vpop.permute.xlu0 %71
    %75 = vset.pattern.permute.xlu0 0
    %76 = vperm.xlu0 %75, %v46
    %v77 = vpop.permute.xlu0 %76
    %80 = vset.pattern.permute.xlu0 0
    %81 = vperm.xlu0 %80, %v47
    %v82 = vpop.permute.xlu0 %81
    %85 = vset.pattern.permute.xlu0 0
    %86 = vperm.xlu0 %85, %v48
    %v87 = vpop.permute.xlu0 %86
    %v89 = vperm.slane %v40, 0
    %v90 = vmul.f32 %v52, %v89
    %v91 = vmul.f32 %v57, %v89
    %v92 = vmul.f32 %v62, %v89
    %v93 = vmul.f32 %v67, %v89
    %v94 = vmul.f32 %v72, %v89
    %v95 = vmul.f32 %v77, %v89
    %v96 = vmul.f32 %v82, %v89
    %v97 = vmul.f32 %v87, %v89
    %98 = vset.pattern.permute.xlu0 1
    %99 = vperm.xlu0 %98, %v41
    %v100 = vpop.permute.xlu0 %99
    %102 = vset.pattern.permute.xlu0 1
    %103 = vperm.xlu0 %102, %v42
    %v104 = vpop.permute.xlu0 %103
    %106 = vset.pattern.permute.xlu0 1
    %107 = vperm.xlu0 %106, %v43
    %v108 = vpop.permute.xlu0 %107
    %110 = vset.pattern.permute.xlu0 1
    %111 = vperm.xlu0 %110, %v44
    %v112 = vpop.permute.xlu0 %111
    %114 = vset.pattern.permute.xlu0 1
    %115 = vperm.xlu0 %114, %v45
    %v116 = vpop.permute.xlu0 %115
    %118 = vset.pattern.permute.xlu0 1
    %119 = vperm.xlu0 %118, %v46
    %v120 = vpop.permute.xlu0 %119
    %122 = vset.pattern.permute.xlu0 1
    %123 = vperm.xlu0 %122, %v47
    %v124 = vpop.permute.xlu0 %123
    %126 = vset.pattern.permute.xlu0 1
    %127 = vperm.xlu0 %126, %v48
    %v128 = vpop.permute.xlu0 %127
    %v130 = vperm.slane %v40, 1
    %v131 = vmul.f32 %v100, %v130
    %v132 = vmul.f32 %v104, %v130
    %v133 = vmul.f32 %v108, %v130
    %v134 = vmul.f32 %v112, %v130
    %v135 = vmul.f32 %v116, %v130
    %v136 = vmul.f32 %v120, %v130
    %v137 = vmul.f32 %v124, %v130
    %v138 = vmul.f32 %v128, %v130
    %v139 = vadd.f32 %v90, %v131
    %v140 = vadd.f32 %v91, %v132
    %v141 = vadd.f32 %v92, %v133
    %v142 = vadd.f32 %v93, %v134
    %v143 = vadd.f32 %v94, %v135
    %v144 = vadd.f32 %v95, %v136
    %v145 = vadd.f32 %v96, %v137
    %v146 = vadd.f32 %v97, %v138
    %v147 = vld [vmem:[%s2] sm:$0xff]
    %v148 = vld [vmem:[%s2 + $0x8] sm:$0xff]
    %v149 = vld [vmem:[%s2 + $0x10] sm:$0xff]
    %v150 = vld [vmem:[%s2 + $0x18] sm:$0xff]
    %v151 = vld [vmem:[%s2 + $0x20] sm:$0xff]
    %v152 = vld [vmem:[%s2 + $0x28] sm:$0xff]
    %v153 = vld [vmem:[%s2 + $0x30] sm:$0xff]
    %v154 = vld [vmem:[%s2 + $0x38] sm:$0xff]
    %156 = vset.pattern.permute.xlu0 0
    %157 = vperm.xlu0 %156, %v147
    %v158 = vpop.permute.xlu0 %157
    %161 = vset.pattern.permute.xlu0 0
    %162 = vperm.xlu0 %161, %v148
    %v163 = vpop.permute.xlu0 %162
    %166 = vset.pattern.permute.xlu0 0
    %167 = vperm.xlu0 %166, %v149
    %v168 = vpop.permute.xlu0 %167
    %171 = vset.pattern.permute.xlu0 0
    %172 = vperm.xlu0 %171, %v150
    %v173 = vpop.permute.xlu0 %172
    %176 = vset.pattern.permute.xlu0 0
    %177 = vperm.xlu0 %176, %v151
    %v178 = vpop.permute.xlu0 %177
    %181 = vset.pattern.permute.xlu0 0
    %182 = vperm.xlu0 %181, %v152
    %v183 = vpop.permute.xlu0 %182
    %186 = vset.pattern.permute.xlu0 0
    %187 = vperm.xlu0 %186, %v153
    %v188 = vpop.permute.xlu0 %187
    %191 = vset.pattern.permute.xlu0 0
    %192 = vperm.xlu0 %191, %v154
    %v193 = vpop.permute.xlu0 %192
    %v195 = vadd.f32 %v139, %v158
    %v196 = vadd.f32 %v140, %v163
    %v197 = vadd.f32 %v141, %v168
    %v198 = vadd.f32 %v142, %v173
    %v199 = vadd.f32 %v143, %v178
    %v200 = vadd.f32 %v144, %v183
    %v201 = vadd.f32 %v145, %v188
    %v202 = vadd.f32 %v146, %v193
    %v203 = vmax.f32 %v195, 0.0
    %v204 = vmax.f32 %v196, 0.0
    %v205 = vmax.f32 %v197, 0.0
    %v206 = vmax.f32 %v198, 0.0
    %v207 = vmax.f32 %v199, 0.0
    %v208 = vmax.f32 %v200, 0.0
    %v209 = vmax.f32 %v201, 0.0
    %v210 = vmax.f32 %v202, 0.0
    %v211 = vpack.c.bf16 %v204, %v203
    %v212 = vpack.c.bf16 %v206, %v205
    %v213 = vpack.c.bf16 %v208, %v207
    %v214 = vpack.c.bf16 %v210, %v209
    %v215 = vld [vmem:[%s3] sm:$0xf]
    %v216 = vld [vmem:[%s3 + $0x4] sm:$0xf]
    %v217 = vld [vmem:[%s3 + $0x8] sm:$0xf]
    %v218 = vld [vmem:[%s3 + $0xc] sm:$0xf]
    %v219 = vld [vmem:[%s3 + $0x10] sm:$0xf]
    %v220 = vld [vmem:[%s3 + $0x14] sm:$0xf]
    %v221 = vld [vmem:[%s3 + $0x18] sm:$0xf]
    %v222 = vld [vmem:[%s3 + $0x1c] sm:$0xf]
    %v223 = vld [vmem:[%s4] sm:$0xff]
    %v224 = vld [vmem:[%s4 + $0x8] sm:$0xff]
    %v225 = vld [vmem:[%s4 + $0x10] sm:$0xff]
    %v226 = vld [vmem:[%s4 + $0x18] sm:$0xff]
    %v227 = vld [vmem:[%s4 + $0x20] sm:$0xff]
    %v228 = vld [vmem:[%s4 + $0x28] sm:$0xff]
    %v229 = vld [vmem:[%s4 + $0x30] sm:$0xff]
    %v230 = vld [vmem:[%s4 + $0x38] sm:$0xff]
    %232 = vset.pattern.permute.xlu0 0
    %233 = vperm.xlu0 %232, %v223
    %v234 = vpop.permute.xlu0 %233
    %237 = vset.pattern.permute.xlu0 0
    %238 = vperm.xlu0 %237, %v224
    %v239 = vpop.permute.xlu0 %238
    %242 = vset.pattern.permute.xlu0 0
    %243 = vperm.xlu0 %242, %v225
    %v244 = vpop.permute.xlu0 %243
    %247 = vset.pattern.permute.xlu0 0
    %248 = vperm.xlu0 %247, %v226
    %v249 = vpop.permute.xlu0 %248
    %252 = vset.pattern.permute.xlu0 0
    %253 = vperm.xlu0 %252, %v227
    %v254 = vpop.permute.xlu0 %253
    %257 = vset.pattern.permute.xlu0 0
    %258 = vperm.xlu0 %257, %v228
    %v259 = vpop.permute.xlu0 %258
    %262 = vset.pattern.permute.xlu0 0
    %263 = vperm.xlu0 %262, %v229
    %v264 = vpop.permute.xlu0 %263
    %267 = vset.pattern.permute.xlu0 0
    %268 = vperm.xlu0 %267, %v230
    %v269 = vpop.permute.xlu0 %268
    %v279 = vunpack.c.l.b16 %v215
    %v280 = vunpack.c.l.b16 %v216
    %v281 = vunpack.c.l.b16 %v217
    %v282 = vunpack.c.l.b16 %v218
    %v283 = vunpack.c.l.b16 %v219
    %v284 = vunpack.c.l.b16 %v220
    %v285 = vunpack.c.l.b16 %v221
    %v286 = vunpack.c.l.b16 %v222
    %v287 = vpack.c.b16 %v280, %v279
    %v288 = vpack.c.b16 %v282, %v281
    %v289 = vpack.c.b16 %v284, %v283
    %v290 = vpack.c.b16 %v286, %v285
    %vm291 = vcmask 523264
    %v293 = vsel %vm291, %v287, 0
    %v296 = vsel %vm291, %v288, 0
    %v299 = vsel %vm291, %v289, 0
    %v302 = vsel %vm291, %v290, 0
    %304 = vmatpush.bf16.msra.mxu0 0
    %305 = vmatpush.bf16.msra.mxu0 0
    %306 = vmatpush.bf16.msra.mxu0 0
    %307 = vmatpush.bf16.msra.mxu0 0
    %308 = vmatpush.bf16.msra.mxu0 %v214
    %309 = vmatpush.bf16.msra.mxu0 %v213
    %310 = vmatpush.bf16.msra.mxu0 %v212
    %311 = vmatpush.bf16.msra.mxu0 %v211
    %312 = vmatmul.bf16.gmra.mxu0 %v293
    %v313 = vpop.f32.mrf.mxu0
    %v314 = vadd.f32 %v234, %v313
    %v315 = vpop.f32.mrf.mxu0
    %v316 = vadd.f32 %v239, %v315
    %317 = vmatmul.bf16.gmra.mxu0 %v296
    %v318 = vpop.f32.mrf.mxu0
    %v319 = vadd.f32 %v244, %v318
    %v320 = vpop.f32.mrf.mxu0
    %v321 = vadd.f32 %v249, %v320
    %322 = vmatmul.bf16.gmra.mxu0 %v299
    %v323 = vpop.f32.mrf.mxu0
    %v324 = vadd.f32 %v254, %v323
    %v325 = vpop.f32.mrf.mxu0
    %v326 = vadd.f32 %v259, %v325
    %327 = vmatmul.bf16.gmra.mxu0 %v302
    %v328 = vpop.f32.mrf.mxu0
    %v329 = vadd.f32 %v264, %v328
    %v330 = vpop.f32.mrf.mxu0
    %v331 = vadd.f32 %v269, %v330
    %332 = vdwg.mxu0
    %v333 = vmax.f32 %v314, 0.0
    %v334 = vmax.f32 %v316, 0.0
    %v335 = vmax.f32 %v319, 0.0
    %v336 = vmax.f32 %v321, 0.0
    %v337 = vmax.f32 %v324, 0.0
    %v338 = vmax.f32 %v326, 0.0
    %v339 = vmax.f32 %v329, 0.0
    %v340 = vmax.f32 %v331, 0.0
    %v341 = vpack.c.bf16 %v334, %v333
    %v342 = vpack.c.bf16 %v336, %v335
    %v343 = vpack.c.bf16 %v338, %v337
    %v344 = vpack.c.bf16 %v340, %v339
    %v345 = vld [vmem:[%s5] sm:$0xf]
    %v346 = vld [vmem:[%s5 + $0x4] sm:$0xf]
    %v347 = vld [vmem:[%s5 + $0x8] sm:$0xf]
    %v348 = vld [vmem:[%s5 + $0xc] sm:$0xf]
    %v349 = vld [vmem:[%s5 + $0x10] sm:$0xf]
    %v350 = vld [vmem:[%s5 + $0x14] sm:$0xf]
    %v351 = vld [vmem:[%s5 + $0x18] sm:$0xf]
    %v352 = vld [vmem:[%s5 + $0x1c] sm:$0xf]
    %v353 = vld [vmem:[%s5 + $0x20] sm:$0xf]
    %v354 = vld [vmem:[%s5 + $0x24] sm:$0xf]
    %v355 = vld [vmem:[%s5 + $0x28] sm:$0xf]
    %v356 = vld [vmem:[%s5 + $0x2c] sm:$0xf]
    %v357 = vld [vmem:[%s5 + $0x30] sm:$0xf]
    %v358 = vld [vmem:[%s5 + $0x34] sm:$0xf]
    %v359 = vld [vmem:[%s5 + $0x38] sm:$0xf]
    %v360 = vld [vmem:[%s5 + $0x3c] sm:$0xf]
    %v361 = vld [vmem:[%s6] sm:$0xff]
    %v362 = vld [vmem:[%s6 + $0x8] sm:$0xff]
    %v363 = vld [vmem:[%s6 + $0x10] sm:$0xff]
    %v364 = vld [vmem:[%s6 + $0x18] sm:$0xff]
    %v365 = vld [vmem:[%s6 + $0x20] sm:$0xff]
    %v366 = vld [vmem:[%s6 + $0x28] sm:$0xff]
    %v367 = vld [vmem:[%s6 + $0x30] sm:$0xff]
    %v368 = vld [vmem:[%s6 + $0x38] sm:$0xff]
    %v369 = vld [vmem:[%s6 + $0x40] sm:$0xff]
    %v370 = vld [vmem:[%s6 + $0x48] sm:$0xff]
    %v371 = vld [vmem:[%s6 + $0x50] sm:$0xff]
    %v372 = vld [vmem:[%s6 + $0x58] sm:$0xff]
    %v373 = vld [vmem:[%s6 + $0x60] sm:$0xff]
    %v374 = vld [vmem:[%s6 + $0x68] sm:$0xff]
    %v375 = vld [vmem:[%s6 + $0x70] sm:$0xff]
    %v376 = vld [vmem:[%s6 + $0x78] sm:$0xff]
    %378 = vset.pattern.permute.xlu0 0
    %379 = vperm.xlu0 %378, %v361
    %v380 = vpop.permute.xlu0 %379
    %383 = vset.pattern.permute.xlu0 0
    %384 = vperm.xlu0 %383, %v362
    %v385 = vpop.permute.xlu0 %384
    %388 = vset.pattern.permute.xlu0 0
    %389 = vperm.xlu0 %388, %v363
    %v390 = vpop.permute.xlu0 %389
    %393 = vset.pattern.permute.xlu0 0
    %394 = vperm.xlu0 %393, %v364
    %v395 = vpop.permute.xlu0 %394
    %398 = vset.pattern.permute.xlu0 0
    %399 = vperm.xlu0 %398, %v365
    %v400 = vpop.permute.xlu0 %399
    %403 = vset.pattern.permute.xlu0 0
    %404 = vperm.xlu0 %403, %v366
    %v405 = vpop.permute.xlu0 %404
    %408 = vset.pattern.permute.xlu0 0
    %409 = vperm.xlu0 %408, %v367
    %v410 = vpop.permute.xlu0 %409
    %413 = vset.pattern.permute.xlu0 0
    %414 = vperm.xlu0 %413, %v368
    %v415 = vpop.permute.xlu0 %414
    %418 = vset.pattern.permute.xlu0 0
    %419 = vperm.xlu0 %418, %v369
    %v420 = vpop.permute.xlu0 %419
    %423 = vset.pattern.permute.xlu0 0
    %424 = vperm.xlu0 %423, %v370
    %v425 = vpop.permute.xlu0 %424
    %428 = vset.pattern.permute.xlu0 0
    %429 = vperm.xlu0 %428, %v371
    %v430 = vpop.permute.xlu0 %429
    %433 = vset.pattern.permute.xlu0 0
    %434 = vperm.xlu0 %433, %v372
    %v435 = vpop.permute.xlu0 %434
    %438 = vset.pattern.permute.xlu0 0
    %439 = vperm.xlu0 %438, %v373
    %v440 = vpop.permute.xlu0 %439
    %443 = vset.pattern.permute.xlu0 0
    %444 = vperm.xlu0 %443, %v374
    %v445 = vpop.permute.xlu0 %444
    %448 = vset.pattern.permute.xlu0 0
    %449 = vperm.xlu0 %448, %v375
    %v450 = vpop.permute.xlu0 %449
    %453 = vset.pattern.permute.xlu0 0
    %454 = vperm.xlu0 %453, %v376
    %v455 = vpop.permute.xlu0 %454
    %v473 = vunpack.c.l.b16 %v345
    %v474 = vunpack.c.l.b16 %v346
    %v475 = vunpack.c.l.b16 %v347
    %v476 = vunpack.c.l.b16 %v348
    %v477 = vunpack.c.l.b16 %v349
    %v478 = vunpack.c.l.b16 %v350
    %v479 = vunpack.c.l.b16 %v351
    %v480 = vunpack.c.l.b16 %v352
    %v481 = vunpack.c.l.b16 %v353
    %v482 = vunpack.c.l.b16 %v354
    %v483 = vunpack.c.l.b16 %v355
    %v484 = vunpack.c.l.b16 %v356
    %v485 = vunpack.c.l.b16 %v357
    %v486 = vunpack.c.l.b16 %v358
    %v487 = vunpack.c.l.b16 %v359
    %v488 = vunpack.c.l.b16 %v360
    %v489 = vpack.c.b16 %v474, %v473
    %v490 = vpack.c.b16 %v476, %v475
    %v491 = vpack.c.b16 %v478, %v477
    %v492 = vpack.c.b16 %v480, %v479
    %v493 = vpack.c.b16 %v482, %v481
    %v494 = vpack.c.b16 %v484, %v483
    %v495 = vpack.c.b16 %v486, %v485
    %v496 = vpack.c.b16 %v488, %v487
    %v498 = vsel %vm291, %v489, 0
    %v501 = vsel %vm291, %v490, 0
    %v504 = vsel %vm291, %v491, 0
    %v507 = vsel %vm291, %v492, 0
    %v510 = vsel %vm291, %v493, 0
    %v513 = vsel %vm291, %v494, 0
    %v516 = vsel %vm291, %v495, 0
    %v519 = vsel %vm291, %v496, 0
    %521 = vmatpush.bf16.msra.mxu0 0
    %522 = vmatpush.bf16.msra.mxu0 0
    %523 = vmatpush.bf16.msra.mxu0 0
    %524 = vmatpush.bf16.msra.mxu0 0
    %525 = vmatpush.bf16.msra.mxu0 %v344
    %526 = vmatpush.bf16.msra.mxu0 %v343
    %527 = vmatpush.bf16.msra.mxu0 %v342
    %528 = vmatpush.bf16.msra.mxu0 %v341
    %529 = vmatmul.bf16.gmra.mxu0 %v498
    %v530 = vpop.f32.mrf.mxu0
    %v531 = vadd.f32 %v380, %v530
    %v532 = vpop.f32.mrf.mxu0
    %v533 = vadd.f32 %v385, %v532
    %534 = vmatmul.bf16.gmra.mxu0 %v501
    %v535 = vpop.f32.mrf.mxu0
    %v536 = vadd.f32 %v390, %v535
    %v537 = vpop.f32.mrf.mxu0
    %v538 = vadd.f32 %v395, %v537
    %539 = vmatmul.bf16.gmra.mxu0 %v504
    %v540 = vpop.f32.mrf.mxu0
    %v541 = vadd.f32 %v400, %v540
    %v542 = vpop.f32.mrf.mxu0
    %v543 = vadd.f32 %v405, %v542
    %544 = vmatmul.bf16.gmra.mxu0 %v507
    %v545 = vpop.f32.mrf.mxu0
    %v546 = vadd.f32 %v410, %v545
    %v547 = vpop.f32.mrf.mxu0
    %v548 = vadd.f32 %v415, %v547
    %549 = vmatmul.bf16.gmra.mxu0 %v510
    %v550 = vpop.f32.mrf.mxu0
    %v551 = vadd.f32 %v420, %v550
    %v552 = vpop.f32.mrf.mxu0
    %v553 = vadd.f32 %v425, %v552
    %554 = vmatmul.bf16.gmra.mxu0 %v513
    %v555 = vpop.f32.mrf.mxu0
    %v556 = vadd.f32 %v430, %v555
    %v557 = vpop.f32.mrf.mxu0
    %v558 = vadd.f32 %v435, %v557
    %559 = vmatmul.bf16.gmra.mxu0 %v516
    %v560 = vpop.f32.mrf.mxu0
    %v561 = vadd.f32 %v440, %v560
    %v562 = vpop.f32.mrf.mxu0
    %v563 = vadd.f32 %v445, %v562
    %564 = vmatmul.bf16.gmra.mxu0 %v519
    %v565 = vpop.f32.mrf.mxu0
    %v566 = vadd.f32 %v450, %v565
    %v567 = vpop.f32.mrf.mxu0
    %v568 = vadd.f32 %v455, %v567
    %569 = vdwg.mxu0
    %v570 = vmax.f32 %v531, 0.0
    %v571 = vmax.f32 %v533, 0.0
    %v572 = vmax.f32 %v536, 0.0
    %v573 = vmax.f32 %v538, 0.0
    %v574 = vmax.f32 %v541, 0.0
    %v575 = vmax.f32 %v543, 0.0
    %v576 = vmax.f32 %v546, 0.0
    %v577 = vmax.f32 %v548, 0.0
    %v578 = vmax.f32 %v551, 0.0
    %v579 = vmax.f32 %v553, 0.0
    %v580 = vmax.f32 %v556, 0.0
    %v581 = vmax.f32 %v558, 0.0
    %v582 = vmax.f32 %v561, 0.0
    %v583 = vmax.f32 %v563, 0.0
    %v584 = vmax.f32 %v566, 0.0
    %v585 = vmax.f32 %v568, 0.0
    %v586 = vpack.c.bf16 %v571, %v570
    %v587 = vpack.c.bf16 %v573, %v572
    %v588 = vpack.c.bf16 %v575, %v574
    %v589 = vpack.c.bf16 %v577, %v576
    %v590 = vpack.c.bf16 %v579, %v578
    %v591 = vpack.c.bf16 %v581, %v580
    %v592 = vpack.c.bf16 %v583, %v582
    %v593 = vpack.c.bf16 %v585, %v584
    %v594 = vld [vmem:[%s7] sm:$0xf]
    %v595 = vld [vmem:[%s7 + $0x4] sm:$0xf]
    %v596 = vld [vmem:[%s7 + $0x8] sm:$0xf]
    %v597 = vld [vmem:[%s7 + $0xc] sm:$0xf]
    %v598 = vld [vmem:[%s7 + $0x10] sm:$0xf]
    %v599 = vld [vmem:[%s7 + $0x14] sm:$0xf]
    %v600 = vld [vmem:[%s7 + $0x18] sm:$0xf]
    %v601 = vld [vmem:[%s7 + $0x1c] sm:$0xf]
    %v602 = vld [vmem:[%s8] sm:$0xff]
    %v603 = vld [vmem:[%s8 + $0x8] sm:$0xff]
    %v604 = vld [vmem:[%s8 + $0x10] sm:$0xff]
    %v605 = vld [vmem:[%s8 + $0x18] sm:$0xff]
    %v606 = vld [vmem:[%s8 + $0x20] sm:$0xff]
    %v607 = vld [vmem:[%s8 + $0x28] sm:$0xff]
    %v608 = vld [vmem:[%s8 + $0x30] sm:$0xff]
    %v609 = vld [vmem:[%s8 + $0x38] sm:$0xff]
    %611 = vset.pattern.permute.xlu0 0
    %612 = vperm.xlu0 %611, %v602
    %v613 = vpop.permute.xlu0 %612
    %616 = vset.pattern.permute.xlu0 0
    %617 = vperm.xlu0 %616, %v603
    %v618 = vpop.permute.xlu0 %617
    %621 = vset.pattern.permute.xlu0 0
    %622 = vperm.xlu0 %621, %v604
    %v623 = vpop.permute.xlu0 %622
    %626 = vset.pattern.permute.xlu0 0
    %627 = vperm.xlu0 %626, %v605
    %v628 = vpop.permute.xlu0 %627
    %631 = vset.pattern.permute.xlu0 0
    %632 = vperm.xlu0 %631, %v606
    %v633 = vpop.permute.xlu0 %632
    %636 = vset.pattern.permute.xlu0 0
    %637 = vperm.xlu0 %636, %v607
    %v638 = vpop.permute.xlu0 %637
    %641 = vset.pattern.permute.xlu0 0
    %642 = vperm.xlu0 %641, %v608
    %v643 = vpop.permute.xlu0 %642
    %646 = vset.pattern.permute.xlu0 0
    %647 = vperm.xlu0 %646, %v609
    %v648 = vpop.permute.xlu0 %647
    %v658 = vunpack.c.l.b16 %v594
    %v659 = vunpack.c.l.b16 %v595
    %v660 = vunpack.c.l.b16 %v596
    %v661 = vunpack.c.l.b16 %v597
    %v662 = vunpack.c.l.b16 %v598
    %v663 = vunpack.c.l.b16 %v599
    %v664 = vunpack.c.l.b16 %v600
    %v665 = vunpack.c.l.b16 %v601
    %v666 = vpack.c.b16 %v659, %v658
    %v667 = vpack.c.b16 %v661, %v660
    %v668 = vpack.c.b16 %v663, %v662
    %v669 = vpack.c.b16 %v665, %v664
    %674 = vmatpush.bf16.msra.mxu0 %v593
    %675 = vmatpush.bf16.msra.mxu0 %v592
    %676 = vmatpush.bf16.msra.mxu0 %v591
    %677 = vmatpush.bf16.msra.mxu0 %v590
    %678 = vmatpush.bf16.msra.mxu0 %v589
    %679 = vmatpush.bf16.msra.mxu0 %v588
    %680 = vmatpush.bf16.msra.mxu0 %v587
    %681 = vmatpush.bf16.msra.mxu0 %v586
    %682 = vmatmul.bf16.gmra.mxu0 %v666
    %v683 = vpop.f32.mrf.mxu0
    %v684 = vadd.f32 %v613, %v683
    %v685 = vpop.f32.mrf.mxu0
    %v686 = vadd.f32 %v618, %v685
    %687 = vmatmul.bf16.gmra.mxu0 %v667
    %v688 = vpop.f32.mrf.mxu0
    %v689 = vadd.f32 %v623, %v688
    %v690 = vpop.f32.mrf.mxu0
    %v691 = vadd.f32 %v628, %v690
    %692 = vmatmul.bf16.gmra.mxu0 %v668
    %v693 = vpop.f32.mrf.mxu0
    %v694 = vadd.f32 %v633, %v693
    %v695 = vpop.f32.mrf.mxu0
    %v696 = vadd.f32 %v638, %v695
    %697 = vmatmul.bf16.gmra.mxu0 %v669
    %v698 = vpop.f32.mrf.mxu0
    %v699 = vadd.f32 %v643, %v698
    %v700 = vpop.f32.mrf.mxu0
    %v701 = vadd.f32 %v648, %v700
    %702 = vdwg.mxu0
    %v703 = vmax.f32 %v684, 0.0
    %v704 = vmax.f32 %v686, 0.0
    %v705 = vmax.f32 %v689, 0.0
    %v706 = vmax.f32 %v691, 0.0
    %v707 = vmax.f32 %v694, 0.0
    %v708 = vmax.f32 %v696, 0.0
    %v709 = vmax.f32 %v699, 0.0
    %v710 = vmax.f32 %v701, 0.0
    %v711 = vpack.c.bf16 %v704, %v703
    %v712 = vpack.c.bf16 %v706, %v705
    %v713 = vpack.c.bf16 %v708, %v707
    %v714 = vpack.c.bf16 %v710, %v709
    %v715 = vld [vmem:[%s9] sm:$0xf]
    %v716 = vld [vmem:[%s9 + $0x4] sm:$0xf]
    %v717 = vld [vmem:[%s10] sm:$0xff]
    %v718 = vld [vmem:[%s10 + $0x8] sm:$0xff]
    %720 = vset.pattern.permute.xlu0 0
    %721 = vperm.xlu0 %720, %v717
    %v722 = vpop.permute.xlu0 %721
    %725 = vset.pattern.permute.xlu0 0
    %726 = vperm.xlu0 %725, %v718
    %v727 = vpop.permute.xlu0 %726
    %v731 = vunpack.c.l.b16 %v715
    %v732 = vunpack.c.l.b16 %v716
    %v733 = vpack.c.b16 %v732, %v731
    %v735 = vsel %vm291, %v733, 0
    %737 = vmatpush.bf16.msra.mxu0 0
    %738 = vmatpush.bf16.msra.mxu0 0
    %739 = vmatpush.bf16.msra.mxu0 0
    %740 = vmatpush.bf16.msra.mxu0 0
    %741 = vmatpush.bf16.msra.mxu0 %v714
    %742 = vmatpush.bf16.msra.mxu0 %v713
    %743 = vmatpush.bf16.msra.mxu0 %v712
    %744 = vmatpush.bf16.msra.mxu0 %v711
    %745 = vmatmul.bf16.gmra.mxu0 %v735
    %v746 = vpop.f32.mrf.mxu0
    %v747 = vadd.f32 %v722, %v746
    %v748 = vpop.f32.mrf.mxu0
    %v749 = vadd.f32 %v727, %v748
    %750 = vdwg.mxu0
    %v751 = vmax.f32 %v747, %v749
    %v752 = vrot.slane %v751, 4
    %v753 = vmax.f32 %v751, %v752
    %v754 = vrot.slane %v753, 2
    %v755 = vmax.f32 %v753, %v754
    %v756 = vrot.slane %v755, 1
    %v757 = vmax.f32 %v755, %v756
    %v758 = vsub.f32 %v747, %v757
    %v759 = vsub.f32 %v749, %v757
    %v760 = vmul.f32 %v758, 1.442695
    %v761 = vpow.pop %v760
    %v762 = vmul.f32 %v759, 1.442695
    %v763 = vpow.pop %v762
    %v764 = vadd.f32 %v761, %v763
    %v765 = vrot.slane %v764, 4
    %v766 = vadd.f32 %v764, %v765
    %v767 = vrot.slane %v766, 2
    %v768 = vadd.f32 %v766, %v767
    %v769 = vrot.slane %v768, 1
    %v770 = vadd.f32 %v768, %v769
    %v771 = vrcp.pop %v770
    %v772 = vmul.f32 %v770, %v771
    %v773 = vsub.f32 1.0, %v772
    %v774 = vmul.f32 %v771, %v773
    %v775 = vadd.f32 %v771, %v774
    %vm776 = vweird.f32 %v770
    %vm777 = vweird.f32 %v771
    %vm778 = vmor %vm776, %vm777
    %v779 = vsel %vm778, %v771, %v775
    %v780 = vand.u32 2147483647, %v770
    %vm781 = vcmp.eq.f32.partialorder %v780, 8.507059e+37
    %v782 = vand.u32 %v770, 2147483648
    %v783 = vor.u32 1.1754944e-38, %v782
    %v784 = vsel %vm781, %v783, %v779
    %v785 = vmul.f32 %v761, %v784
    %v786 = vmul.f32 %v763, %v784
    %787 = vst [vmem:[#allocation2] sm:$0xff] %v785
    %788 = vst [vmem:[#allocation2 + $0x8] sm:$0xff] %v786
    // Predicated region
    $region46: #{tpu_custom_call.1} parent=1 // pred_check
      _
    $region47: #{tpu_custom_call.1} parent=1 // pred_check_branch
      %790 = sbr.rel (0) target = $region49
    $region48: #{tpu_custom_call.1} parent=1 // pred_region
      %792 = vsyncadd [#allocation3], 0
      %s793 = sshll.u32 [#allocation2], 4
      %s794 = int_to_ptr.vmem [resolvable:$true] %s793
      %s795 = sshll.u32 %s11, 4
      %s796 = int_to_ptr.hbm [resolvable:$true] %s795
      %801 = dma.vmem_to_hbm [thread:$0]  %s794, 256, %s796, [#allocation3], 128, 128, 8
    $region49: #{tpu_custom_call.1} parent=1 // pred_fallthru
      _
    // Predicated region
    $region50: #{tpu_custom_call.1} parent=1 // pred_check
      _
    $region51: #{tpu_custom_call.1} parent=1 // pred_check_branch
      %803 = sbr.rel (0) target = $region53
    $region52: #{tpu_custom_call.1} parent=1 // pred_region
      %805 = dma.done [#allocation3], 256
    $region53: #{tpu_custom_call.1} parent=1 // pred_fallthru
      _
    %806 = vsyncpa [#allocation3], 1

</llo_original>
